<compile_context>
chip_gen: v5e
topology: v5e:2x2
jax: 0.10.0
libtpu: 0.0.40
codegen_flags: <defaults>
</compile_context>

<pallas_src>
import functools

import jax
import jax.numpy as jnp
from jax.experimental import pallas as pl
from jax.experimental.pallas import tpu as pltpu

_GROUPS = 8
_EPS = 1e-5


# ---------------------------------------------------------------------------
# pltpu.roll direction probe (run once): we need z[r] = y[r + off].  The probe
# makes the kernel independent of the roll sign convention.
# ---------------------------------------------------------------------------
def _roll_probe_kernel(x_ref, o_ref):
    o_ref[...] = pltpu.roll(x_ref[...], 1, axis=0)


_ROLL_SIGN = None


def _roll_sign():
    """Returns s such that pltpu.roll(y, (s*off) % rows)[r] == y[r + off]."""
    global _ROLL_SIGN
    if _ROLL_SIGN is None:
        col = jnp.arange(8, dtype=jnp.float32).reshape(8, 1)
        x = jnp.tile(col, (1, 128))
        y = pl.pallas_call(
            _roll_probe_kernel,
            out_shape=jax.ShapeDtypeStruct((8, 128), jnp.float32),
        )(x)
        # jnp.roll convention: roll(x, 1)[0] == x[7]
        _ROLL_SIGN = -1 if float(y[0, 0]) == 7.0 else 1
    return _ROLL_SIGN


# ---------------------------------------------------------------------------
# Fused kernel: conv1+GN0 -> conv2(s2)+GN1 -> conv3+GN2 -> conv4+GN3 -> pool
# Operates on an (nb * H * W, Cin) channels-last slab per grid step.
# ---------------------------------------------------------------------------
def _fused_mnist_cnn_kernel(
    x_ref,
    w1_ref, b1_ref, g0_ref, be0_ref,
    w2_ref, b2_ref, g1_ref, be1_ref,
    w3_ref, b3_ref, g2_ref, be2_ref,
    w4_ref, b4_ref, g3_ref, be3_ref,
    o_ref,
    *, nb, hdim, wdim, hdim2, wdim2, roll_sign):
    hw1 = hdim * wdim
    hw2 = hdim2 * wdim2
    r1 = nb * hw1
    r2 = nb * hw2

    # ---- per-row (h, w) coordinates and 3x3 validity masks ----------------
    def make_masks(rows, hh_dim, ww_dim):
        r = jax.lax.broadcasted_iota(jnp.int32, (rows, 1), 0)
        hh = (r // ww_dim) % hh_dim
        ww = r % ww_dim
        masks = []
        for ky in range(3):
            for kx in range(3):
                dy, dx = ky - 1, kx - 1
                masks.append((hh + dy >= 0) & (hh + dy < hh_dim) &
                             (ww + dx >= 0) & (ww + dx < ww_dim))
        return masks

    masks_a = make_masks(r1, hdim, wdim)      # full-resolution grid
    masks_b = make_masks(r2, hdim2, wdim2)    # post-stride-2 grid

    # ---- 3x3 "same" conv as 9 shifted+masked bf16 matmuls (f32 accum) -----
    def conv3x3(act, w_ref, masks, width, rows):
        cout = w_ref.shape[-1]
        acc = jnp.zeros((rows, cout), jnp.float32)
        for ky in range(3):
            for kx in range(3):
                k = ky * 3 + kx
                off = (ky - 1) * width + (kx - 1)
                if off == 0:
                    shifted = act
                else:
                    shifted = pltpu.roll(act, (roll_sign * off) % rows, axis=0)
                shifted = jnp.where(masks[k], shifted, 0.0).astype(jnp.bfloat16)
                acc = acc + jnp.dot(shifted, w_ref[k],
                                    preferred_element_type=jnp.float32)
        return acc

    # ---- GroupNorm: two-pass variance, iota-built group-mixing matrix -----
    def group_norm(act, gamma_ref, beta_ref, hw, rows):
        c = act.shape[-1]
        cg = c // _GROUPS
        ci = jax.lax.broadcasted_iota(jnp.int32, (c, c), 0)
        cj = jax.lax.broadcasted_iota(jnp.int32, (c, c), 1)
        gmix = (ci // cg == cj // cg).astype(jnp.float32)
        inv_n = 1.0 / float(hw * cg)

        a3 = act.reshape(nb, hw, c)
        mean = jnp.dot(jnp.sum(a3, axis=1), gmix,
                       preferred_element_type=jnp.float32) * inv_n   # (nb, c)
        d = a3 - mean[:, None, :]
        var = jnp.dot(jnp.sum(d * d, axis=1), gmix,
                      preferred_element_type=jnp.float32) * inv_n    # (nb, c)
        inv_std = jax.lax.rsqrt(var + _EPS)
        out = d * inv_std[:, None, :] * gamma_ref[...] + beta_ref[...]
        return out.reshape(rows, c)

    x = x_ref[...]                                           # (r1, Cin) f32

    # conv1 + ReLU + GN0
    y = jnp.maximum(conv3x3(x, w1_ref, masks_a, wdim, r1) + b1_ref[...], 0.0)
    y = group_norm(y, g0_ref, be0_ref, hw1, r1)

    # conv2 (stride 2): full-resolution conv, then exact stride-2 selection
    full = conv3x3(y, w2_ref, masks_a, wdim, r1)             # (r1, 128)
    si = jax.lax.broadcasted_iota(jnp.int32, (hw2, hw1), 0)
    ri = jax.lax.broadcasted_iota(jnp.int32, (hw2, hw1), 1)
    tgt = (2 * (si // wdim2)) * wdim + 2 * (si % wdim2)
    sel = (ri == tgt).astype(jnp.float32)                    # (hw2, hw1) 0/1
    subs = [jnp.dot(sel, full[n * hw1:(n + 1) * hw1, :],
                    preferred_element_type=jnp.float32) for n in range(nb)]
    y = subs[0] if nb == 1 else jnp.concatenate(subs, axis=0)  # (r2, 128)
    y = jnp.maximum(y + b2_ref[...], 0.0)
    y = group_norm(y, g1_ref, be1_ref, hw2, r2)

    # conv3 + ReLU + GN2
    y = jnp.maximum(conv3x3(y, w3_ref, masks_b, wdim2, r2) + b3_ref[...], 0.0)
    y = group_norm(y, g2_ref, be2_ref, hw2, r2)

    # conv4 + ReLU + GN3
    y = jnp.maximum(conv3x3(y, w4_ref, masks_b, wdim2, r2) + b4_ref[...], 0.0)
    y = group_norm(y, g3_ref, be3_ref, hw2, r2)

    # global average pool (AdaptiveAvgPool2d((1,1)) + flatten)
    pooled = jnp.mean(y.reshape(nb, hw2, y.shape[-1]), axis=1)   # (nb, C)
    o_ref[:, 0, :] = pooled


# ---------------------------------------------------------------------------
# Wrapper
# ---------------------------------------------------------------------------
def _full_spec(arr):
    ndim = arr.ndim
    return pl.BlockSpec(arr.shape, lambda i: (0,) * ndim)


@functools.partial(jax.jit, static_argnames=("roll_sign",))
def _forward_impl(x_nchw, params, roll_sign):
    x = jnp.transpose(x_nchw, (0, 2, 3, 1)).astype(jnp.float32)   # NHWC
    n, hdim, wdim, cin = x.shape
    hdim2 = (hdim - 1) // 2 + 1
    wdim2 = (wdim - 1) // 2 + 1

    # Samples per grid step: blocks large enough to amortize per-step
    # overhead, while keeping >= 2 grid steps so both v7x cores get work.
    nb = 1 if n < 4 else min(8, n // 2)
    n_pad = ((n + nb - 1) // nb) * nb
    if n_pad != n:
        x = jnp.concatenate(
            [x, jnp.zeros((n_pad - n, hdim, wdim, cin), x.dtype)], axis=0)
    x2 = x.reshape(n_pad * hdim * wdim, cin)

    # Pack weights: (3,3,Cin,Cout) -> (9,Cin,Cout) bf16 (native MXU input).
    def prep_w(w):
        return w.reshape(9, w.shape[2], w.shape[3]).astype(jnp.bfloat16)

    def prep_v(v):
        return v.reshape(1, -1).astype(jnp.float32)

    consts = (
        prep_w(params["w1"]), prep_v(params["b1"]),
        prep_v(params["g0"]), prep_v(params["be0"]),
        prep_w(params["w2"]), prep_v(params["b2"]),
        prep_v(params["g1"]), prep_v(params["be1"]),
        prep_w(params["w3"]), prep_v(params["b3"]),
        prep_v(params["g2"]), prep_v(params["be2"]),
        prep_w(params["w4"]), prep_v(params["b4"]),
        prep_v(params["g3"]), prep_v(params["be3"]),
    )
    cout = params["w4"].shape[-1]

    kernel = functools.partial(
        _fused_mnist_cnn_kernel,
        nb=nb, hdim=hdim, wdim=wdim, hdim2=hdim2, wdim2=wdim2,
        roll_sign=roll_sign)

    out = pl.pallas_call(
        kernel,
        out_shape=jax.ShapeDtypeStruct((n_pad, 1, cout), jnp.float32),
        grid=(n_pad // nb,),
        in_specs=[pl.BlockSpec((nb * hdim * wdim, cin), lambda i: (i, 0))]
                 + [_full_spec(a) for a in consts],
        out_specs=pl.BlockSpec((nb, 1, cout), lambda i: (i, 0, 0)),
        compiler_params=pltpu.CompilerParams(
            dimension_semantics=("parallel",)),
    )(x2, *consts)

    return out[:n, 0, :]


def mnist_cnn_forward(x_nchw, params):
    """Forward pass of DomainBed's MNIST_CNN. Returns (N, 128) features."""
    return _forward_impl(x_nchw, params, roll_sign=_roll_sign())


# ---------------------------------------------------------------------------
# Parameter init (deterministic, synthetic)
# ---------------------------------------------------------------------------
def init_params(key, in_ch):
    ks = jax.random.split(key, 8)

    def conv_init(k, cin, cout):
        fan_in = 9 * cin
        kw, kb = jax.random.split(k)
        w = jax.random.normal(kw, (3, 3, cin, cout), jnp.float32) / jnp.sqrt(fan_in)
        b = jax.random.uniform(kb, (cout,), jnp.float32, -1.0, 1.0) / jnp.sqrt(fan_in)
        return w, b

    def gn_init(k, c):
        kg, kb = jax.random.split(k)
        return (1.0 + 0.1 * jax.random.normal(kg, (c,), jnp.float32),
                0.1 * jax.random.normal(kb, (c,), jnp.float32))

    w1, b1 = conv_init(ks[0], in_ch, 64)
    w2, b2 = conv_init(ks[1], 64, 128)
    w3, b3 = conv_init(ks[2], 128, 128)
    w4, b4 = conv_init(ks[3], 128, 128)
    g0, be0 = gn_init(ks[4], 64)
    g1, be1 = gn_init(ks[5], 128)
    g2, be2 = gn_init(ks[6], 128)
    g3, be3 = gn_init(ks[7], 128)
    return dict(w1=w1, b1=b1, w2=w2, b2=b2, w3=w3, b3=b3, w4=w4, b4=b4,
                g0=g0, be0=be0, g1=g1, be1=be1, g2=g2, be2=be2, g3=g3, be3=be3)


# ---------------------------------------------------------------------------
# Pure-JAX reference (same bf16 matmul inputs as the kernel) for validation
# ---------------------------------------------------------------------------
@jax.jit
def reference_forward(x_nchw, params):
    x = jnp.transpose(x_nchw, (0, 2, 3, 1)).astype(jnp.float32)

    def conv(a, w, b, stride):
        y = jax.lax.conv_general_dilated(
            a.astype(jnp.bfloat16), w.astype(jnp.bfloat16),
            window_strides=(stride, stride), padding=((1, 1), (1, 1)),
            dimension_numbers=("NHWC", "HWIO", "NHWC"),
            preferred_element_type=jnp.float32)
        return jnp.maximum(y + b, 0.0)

    def gn(a, gamma, beta):
        n, hh, ww, c = a.shape
        ag = a.reshape(n, hh * ww, _GROUPS, c // _GROUPS)
        mean = jnp.mean(ag, axis=(1, 3), keepdims=True)
        var = jnp.mean((ag - mean) ** 2, axis=(1, 3), keepdims=True)
        out = (ag - mean) * jax.lax.rsqrt(var + _EPS)
        return out.reshape(n, hh, ww, c) * gamma + beta

    y = gn(conv(x, params["w1"], params["b1"], 1), params["g0"], params["be0"])
    y = gn(conv(y, params["w2"], params["b2"], 2), params["g1"], params["be1"])
    y = gn(conv(y, params["w3"], params["b3"], 1), params["g2"], params["be2"])
    y = gn(conv(y, params["w4"], params["b4"], 1), params["g3"], params["be3"])
    return jnp.mean(y, axis=(1, 2))


if __name__ == "__main__":
    x = jax.random.normal(jax.random.PRNGKey(0), (2, 4, 16, 16), jnp.float32)
    params = init_params(jax.random.PRNGKey(1), in_ch=4)

    out = jax.block_until_ready(mnist_cnn_forward(x, params))
    ref = jax.block_until_ready(reference_forward(x, params))

    assert out.shape == (2, 128), out.shape
    assert bool(jnp.all(jnp.isfinite(out)))
    max_err = float(jnp.max(jnp.abs(out - ref)))
    assert max_err < 2e-2, f"kernel/reference mismatch: max abs err {max_err}"
    print("KERNEL_OK")
</pallas_src>

<mosaic_0001>
module attributes {stable_mosaic.version = 11 : i64} {
  func.func @_roll_probe_kernel(%arg0: memref<8x128xf32, #tpu.memory_space<vmem>>, %arg1: memref<8x128xf32, #tpu.memory_space<vmem>>) attributes {dimension_semantics = [], scalar_prefetch = 0 : i64, scratch_operands = 0 : i64, tpu.core_type = #tpu.core_type<tc>} {
    %c0 = arith.constant 0 : index
    %c0_0 = arith.constant 0 : index
    %0 = vector.load %arg0[%c0, %c0_0] : memref<8x128xf32, #tpu.memory_space<vmem>>, vector<8x128xf32>
    %c1_i32 = arith.constant 1 : i32
    %1 = tpu.dynamic_rotate %0 by %c1_i32 dim 0 : vector<8x128xf32>, i32 -> vector<8x128xf32>
    %c0_1 = arith.constant 0 : index
    %c0_2 = arith.constant 0 : index
    %2 = vector.load %arg1[%c0_1, %c0_2] : memref<8x128xf32, #tpu.memory_space<vmem>>, vector<8x128xf32>
    tpu.vector_store %arg1[%c0_1, %c0_2], %1 {strides = array<i32>} : memref<8x128xf32, #tpu.memory_space<vmem>>, vector<8x128xf32>,
    return
  }
}

</mosaic_0001>

<llo_original>
// kernel: tpu_custom_call.1
$region0: #{tpu_custom_call.1}
  #allocation0 [shape = 'u32[]', space=smem, size = 0x4, offset = 0x4, fixed_abs, tag = 'smem constant byte address 0x4 - core index']
  #allocation1 [shape = 'u32[72,128]{1,0:T(1,128)}', space=vmem, size = 0x9000, scoped, tag = 'internal scratch']
  %s0 = inlined_call_operand.hbm [shape: f32[8,128], index: 0, kind: input, shape index: {}]
  %s1 = inlined_call_operand.hbm [shape: f32[8,128], index: 1, kind: output, shape index: {}]
  %s2 = sld [smem:[#allocation0]]
  $region18: #{tpu_custom_call.1} parent=0
    _
  %s4 = ssub.s32 1, %s2
  %s5 = scalar_select 0, %s4, %s2
  $region1: #{tpu_custom_call.1} parent=0
    #allocation2 [shape = 'u8[4096]{0}', space=vmem, size = 0x1000, scoped, tag = 'input window, operand 0, single buffered']
    #allocation3 [shape = 's32[1]{0}', space=sflag, size = 0x4, scoped, tag = 'scoped memory for tpu_custom_call.1']
    #allocation4 [shape = 's32[1]{0}', space=sflag, size = 0x4, scoped, tag = 'scoped memory for tpu_custom_call.1']
    #allocation5 [shape = 'u8[4096]{0}', space=vmem, size = 0x1000, scoped, tag = 'output window, operand 0, single buffered']
    %6 = vsyncpa [#allocation3], 0
    %7 = vsyncpa [#allocation4], 0
    // Predicated region
    $region2: #{tpu_custom_call.1} parent=1 // pred_check
      _
    $region3: #{tpu_custom_call.1} parent=1 // pred_check_branch
      %9 = sbr.rel (0) target = $region5
    $region4: #{tpu_custom_call.1} parent=1 // pred_region
      %11 = vsyncadd [#allocation3], 0
      %s13 = sshll.u32 %s0, 4
      %s14 = int_to_ptr.hbm [resolvable:$true] %s13
      %s15 = sshll.u32 [#allocation2], 4
      %s16 = int_to_ptr.vmem [resolvable:$true] %s15
      %18 = dma.hbm_to_vmem [thread:$0]  %s14, 128, %s16, [#allocation3]
    $region5: #{tpu_custom_call.1} parent=1 // pred_fallthru
      _
    // Predicated region
    $region6: #{tpu_custom_call.1} parent=1 // pred_check
      _
    $region7: #{tpu_custom_call.1} parent=1 // pred_check_branch
      %20 = sbr.rel (0) target = $region9
    $region8: #{tpu_custom_call.1} parent=1 // pred_region
      %22 = dma.done [#allocation3], 128
    $region9: #{tpu_custom_call.1} parent=1 // pred_fallthru
      _
    %v23 = vld [vmem:[#allocation2] sm:$0xff]
    %v24 = vrot.slane %v23, 7
    %25 = vst [vmem:[#allocation5] sm:$0xff] %v24
    // Predicated region
    $region10: #{tpu_custom_call.1} parent=1 // pred_check
      _
    $region11: #{tpu_custom_call.1} parent=1 // pred_check_branch
      %27 = sbr.rel (0) target = $region13
    $region12: #{tpu_custom_call.1} parent=1 // pred_region
      %29 = vsyncadd [#allocation4], 0
      %s31 = sshll.u32 [#allocation5], 4
      %s32 = int_to_ptr.vmem [resolvable:$true] %s31
      %s33 = sshll.u32 %s1, 4
      %s34 = int_to_ptr.hbm [resolvable:$true] %s33
      %36 = dma.vmem_to_hbm [thread:$0]  %s32, 128, %s34, [#allocation4]
    $region13: #{tpu_custom_call.1} parent=1 // pred_fallthru
      _
    // Predicated region
    $region14: #{tpu_custom_call.1} parent=1 // pred_check
      _
    $region15: #{tpu_custom_call.1} parent=1 // pred_check_branch
      %38 = sbr.rel (0) target = $region17
    $region16: #{tpu_custom_call.1} parent=1 // pred_region
      %40 = dma.done [#allocation4], 128
    $region17: #{tpu_custom_call.1} parent=1 // pred_fallthru
      _
    %41 = vsyncpa [#allocation3], 1
    %42 = vsyncpa [#allocation4], 1

</llo_original>
